<compile_context>
chip_gen: v7x
topology: tpu7x:2x2x1
jax: 0.10.0
libtpu: 0.0.40
codegen_flags: <defaults>
</compile_context>

<pallas_src>
import functools
import math

import jax
import jax.numpy as jnp
from jax.experimental import pallas as pl
from jax.experimental.pallas import tpu as pltpu


def _round_up(x, m):
    return ((x + m - 1) // m) * m


def _cdiv(a, b):
    return -(-a // b)


@functools.lru_cache(maxsize=1)
def _vmem_capacity_bytes():
    """Physical VMEM per core; conservative fallback if the query is unavailable."""
    try:
        return int(pltpu.get_tpu_info().vmem_capacity_bytes)
    except Exception:
        return 64 << 20   # v7x per-TensorCore capacity (smallest current gen)


# ---------------------------------------------------------------------------
# Kernel
# ---------------------------------------------------------------------------
def cnn_encoder_kernel(x_ref, w_ref, b_ref, out_ref, *, window, tb, la, lout,
                       hp, fold):
    """One grid step: TB examples -> (TB, Hp) max-pooled conv outputs.

    x_ref:   (R + RP, D) bf16.  R = tb*la rows (tb examples, time-major, each
             padded to la rows) followed by RP >= window-1 zero tail rows so
             the shifted reads below never leave the block.
    w_ref:   (window*D, Hp) bf16 if fold else (window, D, Hp) bf16 (resident).
    b_ref:   (1, Hp) f32 conv bias (resident).
    out_ref: (1, tb, Hp) f32 pooled output for this block of examples.
    """
    R = tb * la

    if fold:
        # Fold the window into the MXU contraction dim: one matmul with
        # K = window*D instead of `window` matmuls with K = D (plus their
        # f32 accumulation adds).  The rolls/shifts go to cheap slice reads.
        lhs = jnp.concatenate(
            [x_ref[pl.ds(w, R), :] for w in range(window)], axis=1)   # (R, W*D)
        acc = jnp.dot(lhs, w_ref[...], preferred_element_type=jnp.float32)
    else:
        # Chained single-accumulator form (lets v7x's MRB fold the adds into
        # the matmul result buffer; no tree of partial sums).
        acc = jnp.dot(x_ref[pl.ds(0, R), :], w_ref[0],
                      preferred_element_type=jnp.float32)
        for w in range(1, window):
            acc = acc + jnp.dot(x_ref[pl.ds(w, R), :], w_ref[w],
                                preferred_element_type=jnp.float32)

    # Per-example max over the Lout valid conv rows.  Rows t >= lout are
    # example padding / window spill into the next example (or the zero tail)
    # and are masked out — this is what makes the shifted reads above exact.
    s = acc.reshape(tb, la, hp)
    t_idx = jax.lax.broadcasted_iota(jnp.int32, (tb, la, 1), 1)
    s = jnp.where(t_idx < lout, s, -jnp.inf)
    pooled = jnp.max(s, axis=1)                                       # (tb, Hp)
    out_ref[0] = (pooled + b_ref[...]).astype(out_ref.dtype)


# ---------------------------------------------------------------------------
# Tiling plan
# ---------------------------------------------------------------------------
def _plan_tiling(B, la, d, hp, window, rp, fold):
    """Choose examples-per-step (TB), grid size (G) and vmem_limit_bytes."""
    cap = _vmem_capacity_bytes()
    budget = min(max(cap // 3, 8 << 20), 40 << 20)      # per-step block budget
    target_rows = 2048 if cap >= (96 << 20) else 1024   # MXU-M rows per step

    def step_bytes(tb):
        r = tb * la
        n_in = 2 * (r + rp) * d * 2                  # double-buffered bf16 input
        n_w = 2 * window * d * hp * 2                # resident bf16 weights (2 bufs)
        n_b = 2 * hp * 4                             # resident f32 bias
        n_out = 2 * tb * hp * 4                      # double-buffered f32 output
        n_lhs = r * (window * d if fold else d) * 2  # in-kernel LHS value
        n_acc = 2 * r * hp * 4                       # f32 conv result + masked copy
        return n_in + n_w + n_b + n_out + n_lhs + n_acc + (2 << 20)

    tb = max(1, min(B, max(1, target_rows // max(la, 1))))
    while tb > 1 and step_bytes(tb) > budget:
        tb -= 1

    if B >= 2:
        g = max(2, _cdiv(B, tb))
        if g % 2:          # even step count -> balanced across v7x's 2 TensorCores
            g += 1
        tb = _cdiv(B, g)
    else:
        g, tb = 1, 1

    vmem_limit = min(cap * 3 // 4, max(step_bytes(tb) + (8 << 20), 32 << 20))
    return tb, g, int(vmem_limit)


# ---------------------------------------------------------------------------
# Forward
# ---------------------------------------------------------------------------
@functools.partial(jax.jit, static_argnames=("window_size", "padding", "fold"))
def _cnn_encoder_impl(x, weight, bias, *, window_size, padding, fold):
    B, L, D = x.shape
    H, W, Dw = weight.shape
    assert W == window_size and Dw == D

    Lout = L + W - 1 if padding else L - W + 1
    assert Lout >= 1, "sequence too short for window_size without padding"
    Lseg = Lout + (W - 1)            # rows one example's valid windows may touch
    La = _round_up(Lseg, 16)         # per-example time extent (bf16 sublane tile)
    # Invariant the shifted-read trick relies on: every window row that spills
    # past an example's valid region lands at a conv row t >= Lout (masked).
    assert La >= Lseg

    pad_lo = W - 1 if padding else 0
    pad_hi = La - L - pad_lo
    Hp = _round_up(H, 128)           # lane-aligned hidden dim (pad cols sliced off)
    RP = _round_up(W - 1, 16) if W > 1 else 0   # zero tail rows per block

    TB, G, vmem_limit = _plan_tiling(B, La, D, Hp, W, RP, fold)
    Bp = G * TB                      # batch padded up -> no divisibility constraint
    R = TB * La

    # Host-side prep (pad + cast + layout).  Runs inside the same jit as the
    # pallas_call so XLA fuses it into one pass over x / its producer rather
    # than a standalone HBM round trip.
    # TODO(synk): if the upstream producer can emit the padded bf16 layout
    # directly, pass it through and skip this prep entirely.
    xp = jnp.pad(x, ((0, Bp - B), (pad_lo, pad_hi), (0, 0)))          # (Bp, La, D)
    xb = jnp.pad(xp.reshape(G, R, D), ((0, 0), (0, RP), (0, 0)))      # (G, R+RP, D)
    x_flat = xb.reshape(G * (R + RP), D).astype(jnp.bfloat16)

    w_stack = jnp.transpose(weight, (1, 2, 0))                        # (W, D, H)
    w_stack = jnp.pad(w_stack, ((0, 0), (0, 0), (0, Hp - H))).astype(jnp.bfloat16)
    if fold:
        w_stack = w_stack.reshape(W * D, Hp)
        w_spec = pl.BlockSpec((W * D, Hp), lambda i: (0, 0))          # resident
    else:
        w_spec = pl.BlockSpec((W, D, Hp), lambda i: (0, 0, 0))        # resident
    b2 = jnp.pad(bias, (0, Hp - H)).reshape(1, Hp).astype(jnp.float32)

    kernel = functools.partial(cnn_encoder_kernel, window=W, tb=TB, la=La,
                               lout=Lout, hp=Hp, fold=fold)
    out = pl.pallas_call(
        kernel,
        out_shape=jax.ShapeDtypeStruct((G, TB, Hp), jnp.float32),
        grid=(G,),
        in_specs=[
            pl.BlockSpec((R + RP, D), lambda i: (i, 0)),   # per-step input slab
            w_spec,                                        # weights: resident
            pl.BlockSpec((1, Hp), lambda i: (0, 0)),       # bias:    resident
        ],
        out_specs=pl.BlockSpec((1, TB, Hp), lambda i: (i, 0, 0)),
        compiler_params=pltpu.CompilerParams(
            dimension_semantics=("parallel",),
            vmem_limit_bytes=vmem_limit),
    )(x_flat, w_stack, b2)

    return out.reshape(Bp, Hp)[:B, :H]


def cnn_encoder_forward(x, weight, bias, *, window_size=3, padding=True,
                        fold_window=None):
    """CNNEncoder.forward (pooling_type='max', lengths=None, eval mode).

    x: (B, L, D) f32; weight: (H, W, D) f32 (Conv2d weight, in_channels
    squeezed); bias: (H,) f32.  Returns (B, H) f32.
    """
    # TODO(synk): training-mode dropout, per-example `lengths` masking and
    # pooling types other than 'max' are not implemented (eval / lengths=None).
    D = x.shape[-1]
    if fold_window is None:
        # Fold the window into the MXU K dim when D alone would underfill it.
        # Guarded: if this toolchain cannot lower the unaligned lane-dim
        # concatenation, fall back to the chained-matmul path.
        if D < 128 and window_size * D <= 512:
            try:
                out = _cnn_encoder_impl(x, weight, bias, window_size=window_size,
                                        padding=padding, fold=True)
                return jax.block_until_ready(out)
            except Exception:
                pass
        fold_window = False
    return _cnn_encoder_impl(x, weight, bias, window_size=window_size,
                             padding=padding, fold=fold_window)


if __name__ == "__main__":
    key = jax.random.PRNGKey(0)
    # Small shapes consistent with the module (hidden_size default = 168).
    B, L, D, H, W = 4, 8, 32, 168, 3
    k_x, k_w, k_b = jax.random.split(key, 3)

    x = jax.random.normal(k_x, (B, L, D), dtype=jnp.float32)

    # Deterministic parameter init mirroring the module:
    #   conv weight: xavier_uniform_ (fan_in = 1*W*D, fan_out = H*W*D)
    #   conv bias:   default Conv2d uniform(-1/sqrt(fan_in), 1/sqrt(fan_in))
    fan_in = 1 * W * D
    fan_out = H * W * D
    w_bound = math.sqrt(6.0 / (fan_in + fan_out))
    weight = jax.random.uniform(k_w, (H, W, D), jnp.float32, -w_bound, w_bound)
    b_bound = 1.0 / math.sqrt(fan_in)
    bias = jax.random.uniform(k_b, (H,), jnp.float32, -b_bound, b_bound)

    out = cnn_encoder_forward(x, weight, bias, window_size=W, padding=True)
    out = jax.block_until_ready(out)
    assert out.shape == (B, H)

    # Pure-JAX f32 reference (same semantics as the PyTorch forward,
    # lengths=None, eval mode).  Tolerance is intentionally loose: the kernel
    # runs the MXU in bf16 with f32 accumulation (inference precision).
    xp = jnp.pad(x, ((0, 0), (W - 1, W - 1), (0, 0)))
    Lout = L + W - 1
    win = jnp.stack([xp[:, t:t + Lout, :] for t in range(W)],
                    axis=2).reshape(B, Lout, W * D)
    ref = jnp.max(jnp.einsum("btk,hk->bth", win, weight.reshape(H, W * D)) + bias,
                  axis=1)
    assert jnp.allclose(out, ref, atol=5e-2, rtol=5e-2), \
        "Pallas output mismatch vs JAX reference"

    print("KERNEL_OK")
</pallas_src>

<mosaic_0001>
module attributes {stable_mosaic.version = 11 : i64} {
  func.func @cnn_encoder_kernel(%arg0: i32, %arg1: memref<48x32xbf16, #tpu.memory_space<vmem>>, %arg2: memref<96x256xbf16, #tpu.memory_space<vmem>>, %arg3: memref<1x256xf32, #tpu.memory_space<vmem>>, %arg4: memref<1x2x256xf32, #tpu.memory_space<vmem>>) attributes {dimension_semantics = [#tpu.dimension_semantics<parallel>], iteration_bounds = array<i64: 2>, scalar_prefetch = 0 : i64, scratch_operands = 0 : i64, tpu.core_type = #tpu.core_type<tc>, window_params = [{transform_indices = @transform_0, window_bounds = array<i64: 48, 32>}, {pipeline_mode = #tpu.pipeline_mode<synchronous>, transform_indices = @transform_1, window_bounds = array<i64: 96, 256>}, {pipeline_mode = #tpu.pipeline_mode<synchronous>, transform_indices = @transform_2, window_bounds = array<i64: 1, 256>}, {transform_indices = @transform_3, window_bounds = array<i64: 1, 2, 256>}]} {
    %c0 = arith.constant 0 : index
    %c0_0 = arith.constant 0 : index
    %0 = vector.load %arg1[%c0, %c0_0] : memref<48x32xbf16, #tpu.memory_space<vmem>>, vector<32x32xbf16>
    %c1 = arith.constant 1 : index
    %c0_1 = arith.constant 0 : index
    %1 = vector.load %arg1[%c1, %c0_1] : memref<48x32xbf16, #tpu.memory_space<vmem>>, vector<32x32xbf16>
    %c2 = arith.constant 2 : index
    %c0_2 = arith.constant 0 : index
    %2 = vector.load %arg1[%c2, %c0_2] : memref<48x32xbf16, #tpu.memory_space<vmem>>, vector<32x32xbf16>
    %3 = tpu.concatenate %0, %1, %2 in 1 : vector<32x32xbf16>, vector<32x32xbf16>, vector<32x32xbf16> -> vector<32x96xbf16>
    %c0_3 = arith.constant 0 : index
    %c0_4 = arith.constant 0 : index
    %4 = vector.load %arg2[%c0_3, %c0_4] : memref<96x256xbf16, #tpu.memory_space<vmem>>, vector<96x256xbf16>
    %cst = arith.constant dense<0.000000e+00> : vector<32x256xf32>
    %5 = tpu.matmul %3, %4, %cst {dimension_numbers = #tpu.dot_dimension_numbers<[1], [0], [0], [1], [0, 0, 1, 1], [], []>} : vector<32x96xbf16>, vector<96x256xbf16>, vector<32x256xf32> -> vector<32x256xf32>
    %6 = vector.shape_cast %5 : vector<32x256xf32> to vector<2x16x256xf32>
    %7 = tpu.iota {dimensions = array<i32: 1>} : vector<2x16x1xi32>
    %c10_i32 = arith.constant 10 : i32
    %8 = vector.broadcast %c10_i32 : i32 to vector<2x16x1xi32>
    %9 = arith.cmpi slt, %7, %8 : vector<2x16x1xi32>
    %cst_5 = arith.constant 0xFF800000 : f32
    %10 = vector.shape_cast %9 : vector<2x16x1xi1> to vector<2x16x1xi1>
    %11 = vector.broadcast %10 : vector<2x16x1xi1> to vector<2x16x256xi1>
    %12 = vector.broadcast %cst_5 : f32 to vector<2x16x256xf32>
    %13 = arith.select %11, %6, %12 : vector<2x16x256xi1>, vector<2x16x256xf32>
    %cst_6 = arith.constant dense<0xFF800000> : vector<2x256xf32>
    %14 = vector.multi_reduction <maximumf>, %13, %cst_6 [1] : vector<2x16x256xf32> to vector<2x256xf32>
    %c0_7 = arith.constant 0 : index
    %c0_8 = arith.constant 0 : index
    %15 = vector.load %arg3[%c0_7, %c0_8] : memref<1x256xf32, #tpu.memory_space<vmem>>, vector<1x256xf32>
    %16 = vector.broadcast %15 : vector<1x256xf32> to vector<2x256xf32>
    %17 = arith.addf %14, %16 : vector<2x256xf32>
    %c0_9 = arith.constant 0 : index
    %c0_10 = arith.constant 0 : index
    %c0_11 = arith.constant 0 : index
    %18 = vector.load %arg4[%c0_9, %c0_10, %c0_11] : memref<1x2x256xf32, #tpu.memory_space<vmem>>, vector<1x2x256xf32>
    %19 = vector.shape_cast %18 : vector<1x2x256xf32> to vector<2x256xf32>
    %20 = vector.shape_cast %17 : vector<2x256xf32> to vector<1x2x256xf32>
    tpu.vector_store %arg4[%c0_9, %c0_10, %c0_11], %20 {strides = array<i32>} : memref<1x2x256xf32, #tpu.memory_space<vmem>>, vector<1x2x256xf32>,
    return
  }
  func.func @transform_0(%arg0: i32) -> (i32, i32) {
    %c0_i32 = arith.constant 0 : i32
    %c0_i32_0 = arith.constant 0 : i32
    return %arg0, %c0_i32 : i32, i32
  }
  func.func @transform_1(%arg0: i32) -> (i32, i32) {
    %c0_i32 = arith.constant 0 : i32
    %c0_i32_0 = arith.constant 0 : i32
    %c0_i32_1 = arith.constant 0 : i32
    return %c0_i32, %c0_i32_0 : i32, i32
  }
  func.func @transform_2(%arg0: i32) -> (i32, i32) {
    %c0_i32 = arith.constant 0 : i32
    %c0_i32_0 = arith.constant 0 : i32
    %c0_i32_1 = arith.constant 0 : i32
    return %c0_i32, %c0_i32_0 : i32, i32
  }
  func.func @transform_3(%arg0: i32) -> (i32, i32, i32) {
    %c0_i32 = arith.constant 0 : i32
    %c0_i32_0 = arith.constant 0 : i32
    %c0_i32_1 = arith.constant 0 : i32
    return %arg0, %c0_i32, %c0_i32_0 : i32, i32, i32
  }
}

module attributes {stable_mosaic.version = 11 : i64} {
  func.func @cnn_encoder_kernel(%arg0: i32, %arg1: memref<48x32xbf16, #tpu.memory_space<vmem>>, %arg2: memref<3x32x256xbf16, #tpu.memory_space<vmem>>, %arg3: memref<1x256xf32, #tpu.memory_space<vmem>>, %arg4: memref<1x2x256xf32, #tpu.memory_space<vmem>>) attributes {dimension_semantics = [#tpu.dimension_semantics<parallel>], iteration_bounds = array<i64: 2>, scalar_prefetch = 0 : i64, scratch_operands = 0 : i64, tpu.core_type = #tpu.core_type<tc>, window_params = [{transform_indices = @transform_0, window_bounds = array<i64: 48, 32>}, {pipeline_mode = #tpu.pipeline_mode<synchronous>, transform_indices = @transform_1, window_bounds = array<i64: 3, 32, 256>}, {pipeline_mode = #tpu.pipeline_mode<synchronous>, transform_indices = @transform_2, window_bounds = array<i64: 1, 256>}, {transform_indices = @transform_3, window_bounds = array<i64: 1, 2, 256>}]} {
    %c0 = arith.constant 0 : index
    %c0_0 = arith.constant 0 : index
    %0 = vector.load %arg1[%c0, %c0_0] : memref<48x32xbf16, #tpu.memory_space<vmem>>, vector<32x32xbf16>
    %c0_1 = arith.constant 0 : index
    %c0_2 = arith.constant 0 : index
    %c0_3 = arith.constant 0 : index
    %1 = vector.load %arg2[%c0_1, %c0_2, %c0_3] : memref<3x32x256xbf16, #tpu.memory_space<vmem>>, vector<1x32x256xbf16>
    %2 = vector.shape_cast %1 : vector<1x32x256xbf16> to vector<32x256xbf16>
    %cst = arith.constant dense<0.000000e+00> : vector<32x256xf32>
    %3 = tpu.matmul %0, %2, %cst {dimension_numbers = #tpu.dot_dimension_numbers<[1], [0], [0], [1], [0, 0, 1, 1], [], []>} : vector<32x32xbf16>, vector<32x256xbf16>, vector<32x256xf32> -> vector<32x256xf32>
    %c1 = arith.constant 1 : index
    %c0_4 = arith.constant 0 : index
    %4 = vector.load %arg1[%c1, %c0_4] : memref<48x32xbf16, #tpu.memory_space<vmem>>, vector<32x32xbf16>
    %c1_5 = arith.constant 1 : index
    %c0_6 = arith.constant 0 : index
    %c0_7 = arith.constant 0 : index
    %5 = vector.load %arg2[%c1_5, %c0_6, %c0_7] : memref<3x32x256xbf16, #tpu.memory_space<vmem>>, vector<1x32x256xbf16>
    %6 = vector.shape_cast %5 : vector<1x32x256xbf16> to vector<32x256xbf16>
    %cst_8 = arith.constant dense<0.000000e+00> : vector<32x256xf32>
    %7 = tpu.matmul %4, %6, %cst_8 {dimension_numbers = #tpu.dot_dimension_numbers<[1], [0], [0], [1], [0, 0, 1, 1], [], []>} : vector<32x32xbf16>, vector<32x256xbf16>, vector<32x256xf32> -> vector<32x256xf32>
    %8 = arith.addf %3, %7 : vector<32x256xf32>
    %c2 = arith.constant 2 : index
    %c0_9 = arith.constant 0 : index
    %9 = vector.load %arg1[%c2, %c0_9] : memref<48x32xbf16, #tpu.memory_space<vmem>>, vector<32x32xbf16>
    %c2_10 = arith.constant 2 : index
    %c0_11 = arith.constant 0 : index
    %c0_12 = arith.constant 0 : index
    %10 = vector.load %arg2[%c2_10, %c0_11, %c0_12] : memref<3x32x256xbf16, #tpu.memory_space<vmem>>, vector<1x32x256xbf16>
    %11 = vector.shape_cast %10 : vector<1x32x256xbf16> to vector<32x256xbf16>
    %cst_13 = arith.constant dense<0.000000e+00> : vector<32x256xf32>
    %12 = tpu.matmul %9, %11, %cst_13 {dimension_numbers = #tpu.dot_dimension_numbers<[1], [0], [0], [1], [0, 0, 1, 1], [], []>} : vector<32x32xbf16>, vector<32x256xbf16>, vector<32x256xf32> -> vector<32x256xf32>
    %13 = arith.addf %8, %12 : vector<32x256xf32>
    %14 = vector.shape_cast %13 : vector<32x256xf32> to vector<2x16x256xf32>
    %15 = tpu.iota {dimensions = array<i32: 1>} : vector<2x16x1xi32>
    %c10_i32 = arith.constant 10 : i32
    %16 = vector.broadcast %c10_i32 : i32 to vector<2x16x1xi32>
    %17 = arith.cmpi slt, %15, %16 : vector<2x16x1xi32>
    %cst_14 = arith.constant 0xFF800000 : f32
    %18 = vector.shape_cast %17 : vector<2x16x1xi1> to vector<2x16x1xi1>
    %19 = vector.broadcast %18 : vector<2x16x1xi1> to vector<2x16x256xi1>
    %20 = vector.broadcast %cst_14 : f32 to vector<2x16x256xf32>
    %21 = arith.select %19, %14, %20 : vector<2x16x256xi1>, vector<2x16x256xf32>
    %cst_15 = arith.constant dense<0xFF800000> : vector<2x256xf32>
    %22 = vector.multi_reduction <maximumf>, %21, %cst_15 [1] : vector<2x16x256xf32> to vector<2x256xf32>
    %c0_16 = arith.constant 0 : index
    %c0_17 = arith.constant 0 : index
    %23 = vector.load %arg3[%c0_16, %c0_17] : memref<1x256xf32, #tpu.memory_space<vmem>>, vector<1x256xf32>
    %24 = vector.broadcast %23 : vector<1x256xf32> to vector<2x256xf32>
    %25 = arith.addf %22, %24 : vector<2x256xf32>
    %c0_18 = arith.constant 0 : index
    %c0_19 = arith.constant 0 : index
    %c0_20 = arith.constant 0 : index
    %26 = vector.load %arg4[%c0_18, %c0_19, %c0_20] : memref<1x2x256xf32, #tpu.memory_space<vmem>>, vector<1x2x256xf32>
    %27 = vector.shape_cast %26 : vector<1x2x256xf32> to vector<2x256xf32>
    %28 = vector.shape_cast %25 : vector<2x256xf32> to vector<1x2x256xf32>
    tpu.vector_store %arg4[%c0_18, %c0_19, %c0_20], %28 {strides = array<i32>} : memref<1x2x256xf32, #tpu.memory_space<vmem>>, vector<1x2x256xf32>,
    return
  }
  func.func @transform_0(%arg0: i32) -> (i32, i32) {
    %c0_i32 = arith.constant 0 : i32
    %c0_i32_0 = arith.constant 0 : i32
    return %arg0, %c0_i32 : i32, i32
  }
  func.func @transform_1(%arg0: i32) -> (i32, i32, i32) {
    %c0_i32 = arith.constant 0 : i32
    %c0_i32_0 = arith.constant 0 : i32
    %c0_i32_1 = arith.constant 0 : i32
    %c0_i32_2 = arith.constant 0 : i32
    return %c0_i32, %c0_i32_0, %c0_i32_1 : i32, i32, i32
  }
  func.func @transform_2(%arg0: i32) -> (i32, i32) {
    %c0_i32 = arith.constant 0 : i32
    %c0_i32_0 = arith.constant 0 : i32
    %c0_i32_1 = arith.constant 0 : i32
    return %c0_i32, %c0_i32_0 : i32, i32
  }
  func.func @transform_3(%arg0: i32) -> (i32, i32, i32) {
    %c0_i32 = arith.constant 0 : i32
    %c0_i32_0 = arith.constant 0 : i32
    %c0_i32_1 = arith.constant 0 : i32
    return %arg0, %c0_i32, %c0_i32_0 : i32, i32, i32
  }
}

</mosaic_0001>

<llo_original>
// kernel: _cnn_encoder_impl.1
$region0: #{_cnn_encoder_impl.1}
  #allocation0 [shape = 'u32[]', space=smem, size = 0x4, offset = 0x4, fixed_abs, tag = 'smem constant byte address 0x4 - core index']
  #allocation1 [shape = 'u32[144,128]{1,0:T(1,128)}', space=vmem, size = 0x12000, scoped, tag = 'internal scratch']
  %s0 = inlined_call_operand.vmem [shape: bf16[96,32], index: 0, kind: input, shape index: {}]
  %s1 = inlined_call_operand.vmem [shape: bf16[96,256], index: 1, kind: input, shape index: {}]
  %s2 = inlined_call_operand.vmem [shape: f32[1,256], index: 2, kind: input, shape index: {}]
  %s3 = inlined_call_operand.vmem [shape: f32[2,2,256], index: 3, kind: output, shape index: {}]
  %s4 = sld [smem:[#allocation0]]
  $region45: #{_cnn_encoder_impl.1} parent=0
    _
  %s6 = ssub.s32 1, %s4
  %s7 = scalar_select 0, %s6, %s4
  loop: start=0, step=1, limit=4
  $region2: #{_cnn_encoder_impl.1} parent=0 // loop_pre_header
    _
  $region3: #{_cnn_encoder_impl.1} parent=0 // loop_header
    %s9 = sphi 0, %s13
    %p10 = scmp.ge.s32.totalorder %s9, 4
    %s19 = sphi 0, %s21
    %s22 = sphi 0, %s19
    %s23 = sphi 0, %s22
    %s39 = sphi 0, %s23
    %s43 = sphi 0, %s43
    %s45 = sphi 0, %s43
    %s46 = sphi 0, %s45
    %s60 = sphi 0, %s46
    %s64 = sphi 0, %s64
    %s66 = sphi 0, %s64
    %s67 = sphi 0, %s66
    %s81 = sphi 0, %s67
    %s87 = sphi 0, %s89
    %s90 = sphi 0, %s87
    %s91 = sphi 0, %s90
    %s107 = sphi 0, %s91
  $region4: #{_cnn_encoder_impl.1} parent=0 // loop_header_branch
    %12 = sbr.rel (%p10) target = $region8
  $region5: #{_cnn_encoder_impl.1} parent=0 // loop_body
    %s14 = ssub.s32 %s9, 1
    %s15 = ssub.s32 %s9, 2
    %s16 = sadd.s32 %s9, 1
    %s17 = ssub.s32 %s9, %s16
    %p18 = scmp.eq.s32.totalorder %s17, 0
    %s20 = sadd.s32 %s19, 1
    %s21 = scalar_select %p18, %s19, %s20
    %p24 = pneg %p18
    %p25 = scmp.eq.s32.totalorder %s9, 1
    %p26 = por %p24, %p25
    %p27 = scmp.ne.s32.totalorder %s19, %s22
    %p28 = scmp.eq.s32.totalorder %s9, 0
    %p29 = por %p27, %p28
    %p30 = scmp.ne.s32.totalorder %s19, %s22
    %p31 = scmp.eq.s32.totalorder %s14, 1
    %p32 = por %p30, %p31
    %p33 = scmp.ne.s32.totalorder %s22, %s23
    %p34 = scmp.eq.s32.totalorder %s14, 0
    %p35 = por %p33, %p34
    %p36 = scmp.ne.s32.totalorder %s22, %s23
    %p37 = scmp.eq.s32.totalorder %s15, 1
    %p38 = por %p36, %p37
    %p40 = scmp.ne.s32.totalorder %s23, %s39
    %p41 = scmp.eq.s32.totalorder %s15, 0
    %p42 = por %p40, %p41
    %s44 = sadd.s32 %s43, 1
    %p47 = scmp.eq.s32.totalorder %s9, 1
    %p48 = scmp.ne.s32.totalorder %s43, %s45
    %p49 = scmp.eq.s32.totalorder %s9, 0
    %p50 = por %p48, %p49
    %p51 = scmp.ne.s32.totalorder %s43, %s45
    %p52 = scmp.eq.s32.totalorder %s14, 1
    %p53 = por %p51, %p52
    %p54 = scmp.ne.s32.totalorder %s45, %s46
    %p55 = scmp.eq.s32.totalorder %s14, 0
    %p56 = por %p54, %p55
    %p57 = scmp.ne.s32.totalorder %s45, %s46
    %p58 = scmp.eq.s32.totalorder %s15, 1
    %p59 = por %p57, %p58
    %p61 = scmp.ne.s32.totalorder %s46, %s60
    %p62 = scmp.eq.s32.totalorder %s15, 0
    %p63 = por %p61, %p62
    %s65 = sadd.s32 %s64, 1
    %p68 = scmp.eq.s32.totalorder %s9, 1
    %p69 = scmp.ne.s32.totalorder %s64, %s66
    %p70 = scmp.eq.s32.totalorder %s9, 0
    %p71 = por %p69, %p70
    %p72 = scmp.ne.s32.totalorder %s64, %s66
    %p73 = scmp.eq.s32.totalorder %s14, 1
    %p74 = por %p72, %p73
    %p75 = scmp.ne.s32.totalorder %s66, %s67
    %p76 = scmp.eq.s32.totalorder %s14, 0
    %p77 = por %p75, %p76
    %p78 = scmp.ne.s32.totalorder %s66, %s67
    %p79 = scmp.eq.s32.totalorder %s15, 1
    %p80 = por %p78, %p79
    %p82 = scmp.ne.s32.totalorder %s67, %s81
    %p83 = scmp.eq.s32.totalorder %s15, 0
    %p84 = por %p82, %p83
    %s85 = ssub.s32 %s9, %s16
    %p86 = scmp.eq.s32.totalorder %s85, 0
    %s88 = sadd.s32 %s87, 1
    %s89 = scalar_select %p86, %s87, %s88
    %p92 = pneg %p86
    %p93 = scmp.eq.s32.totalorder %s9, 1
    %p94 = por %p92, %p93
    %p95 = scmp.ne.s32.totalorder %s87, %s90
    %p96 = scmp.eq.s32.totalorder %s9, 0
    %p97 = por %p95, %p96
    %p98 = scmp.ne.s32.totalorder %s87, %s90
    %p99 = scmp.eq.s32.totalorder %s14, 1
    %p100 = por %p98, %p99
    %p101 = scmp.ne.s32.totalorder %s90, %s91
    %p102 = scmp.eq.s32.totalorder %s14, 0
    %p103 = por %p101, %p102
    %p104 = scmp.ne.s32.totalorder %s90, %s91
    %p105 = scmp.eq.s32.totalorder %s15, 1
    %p106 = por %p104, %p105
    %p108 = scmp.ne.s32.totalorder %s91, %s107
    %p109 = scmp.eq.s32.totalorder %s15, 0
    %p110 = por %p108, %p109
    %p111 = scmp.le.s32.totalorder 1, %s9
    %p112 = scmp.lt.s32.totalorder %s9, 3
    %p113 = pnand %p111, %p112
    %p114 = pneg %p113
    // Predicated region
    $region9: #{_cnn_encoder_impl.1} parent=5 // pred_check
      _
    $region10: #{_cnn_encoder_impl.1} parent=5 // pred_check_branch
      %116 = sbr.rel (%p113) target = $region12
    $region11: #{_cnn_encoder_impl.1} parent=5 // pred_region
      %s117 = ssub.s32 %s9, 1
      // Predicated region
      $region13: #{_cnn_encoder_impl.1} parent=11 // pred_check
        %p118 = pneg %p56
      $region14: #{_cnn_encoder_impl.1} parent=11 // pred_check_branch
        %120 = sbr.rel (%p118) target = $region16
      $region15: #{_cnn_encoder_impl.1} parent=11 // pred_region
        _
      $region16: #{_cnn_encoder_impl.1} parent=11 // pred_fallthru
        _
      // Predicated region
      $region17: #{_cnn_encoder_impl.1} parent=11 // pred_check
        %p121 = pneg %p77
      $region18: #{_cnn_encoder_impl.1} parent=11 // pred_check_branch
        %123 = sbr.rel (%p121) target = $region20
      $region19: #{_cnn_encoder_impl.1} parent=11 // pred_region
        _
      $region20: #{_cnn_encoder_impl.1} parent=11 // pred_fallthru
        _
    $region12: #{_cnn_encoder_impl.1} parent=5 // pred_fallthru
      _
    %p124 = scmp.lt.s32.totalorder %s9, 2
    // Predicated region
    $region21: #{_cnn_encoder_impl.1} parent=5 // pred_check
      %p125 = pneg %p124
    $region22: #{_cnn_encoder_impl.1} parent=5 // pred_check_branch
      %127 = sbr.rel (%p125) target = $region24
    $region23: #{_cnn_encoder_impl.1} parent=5 // pred_region
      // Predicated region
      $region25: #{_cnn_encoder_impl.1} parent=23 // pred_check
        %p128 = pneg %p29
      $region26: #{_cnn_encoder_impl.1} parent=23 // pred_check_branch
        %130 = sbr.rel (%p128) target = $region28
      $region27: #{_cnn_encoder_impl.1} parent=23 // pred_region
        %s131 = smul.u32 6, %s9
        %p132 = scmp.lt.s32.totalorder %s131, 11
        %s133 = scalar_select %p132, %s131, 11
        %s134 = smul.addr %s133, 4
        %s135 = scalar_lea.vmem %s0, %s134
        %s136 = smul.u32 6, %s9
      $region28: #{_cnn_encoder_impl.1} parent=23 // pred_fallthru
        _
    $region24: #{_cnn_encoder_impl.1} parent=5 // pred_fallthru
      _
    %p137 = scmp.le.s32.totalorder 1, %s9
    %p138 = scmp.lt.s32.totalorder %s9, 3
    %p139 = pnand %p137, %p138
    %p140 = pneg %p139
    // Predicated region
    $region29: #{_cnn_encoder_impl.1} parent=5 // pred_check
      _
    $region30: #{_cnn_encoder_impl.1} parent=5 // pred_check_branch
      %142 = sbr.rel (%p139) target = $region32
    $region31: #{_cnn_encoder_impl.1} parent=5 // pred_region
      %s143 = ssub.s32 %s9, 1
      %s144 = smul.u32 6, %s14
      %p145 = scmp.lt.s32.totalorder %s144, 11
      %s146 = scalar_select %p145, %s144, 11
      %s147 = smul.addr %s146, 4
      %s148 = scalar_lea.vmem %s0, %s147
      %p149 = pneg %p35
      %p150 = pneg %p32
      %p151 = pneg %p56
      %p152 = pneg %p53
      %p153 = pneg %p77
      %p154 = pneg %p74
      %p155 = pneg %p103
      %p156 = pneg %p100
      %p157 = scmp.lt.s32.totalorder %s14, 1
      %s158 = scalar_select %p157, %s14, 1
      %s159 = smul.addr %s158, 2
      %s160 = smul.addr %s159, 2
      %s161 = scalar_lea.vmem %s3, %s160
      %s162 = smul.u32 6, %s14
      %p163 = scmp.lt.s32.totalorder %s162, 11
      %s164 = scalar_select %p163, %s162, 11
      %s165 = smul.addr %s164, 4
      %s166 = scalar_lea.vmem %s0, %s165
      %s167 = smul.u32 6, %s14
      %p168 = scmp.lt.s32.totalorder %s14, 1
      %s169 = scalar_select %p168, %s14, 1
      %s170 = smul.addr %s169, 2
      %s171 = smul.addr %s170, 2
      %s172 = scalar_lea.vmem %s3, %s171
      %v174 = vld [vmem:[%s166] sm:$0xf]
      %v175 = vld [vmem:[%s166 + $0x4] sm:$0xf]
      %v176 = vld [vmem:[%s166 + $0x8] sm:$0xf]
      %v177 = vld [vmem:[%s166 + $0xc] sm:$0xf]
      %v178 = vld [vmem:[%s166 + $0x10] sm:$0x1]
      %v179 = vld [vmem:[%s166] sm:$0xe]
      %v184 = vunpack.c.l.b16 %v174
      %v185 = vunpack.c.l.b16 %v175
      %v186 = vunpack.c.l.b16 %v176
      %v187 = vunpack.c.l.b16 %v177
      %v188 = vpack.c.b16 %v185, %v184
      %v189 = vpack.c.b16 %v187, %v186
      %v191 = vunpack.c.l.b16 %v178
      %v192 = vpack.c.b16 %v191, %v191
      %vm193 = vsmask.f32 7424
      %v195 = vshrl.u32 %v188, 16
      %v197 = vshll.u32 %v188, 16
      %v199 = vrot.slane %v197, 1
      %v200 = vor.u32 %v195, %v199
      %v202 = vshll.u32 %v189, 16
      %v204 = vrot.slane %v202, 1
      %v205 = vsel %vm193, %v200, %v204
      %v206 = vshrl.u32 %v189, 16
      %v208 = vor.u32 %v206, %v204
      %v210 = vshll.u32 %v192, 16
      %v212 = vrot.slane %v210, 1
      %v213 = vsel %vm193, %v208, %v212
      %214 = vrot.lane.b32.xlu0 %v205, 32
      %v215 = vpop.permute.xlu0 %214
      %216 = vrot.lane.b32.xlu0 %v213, 32
      %v217 = vpop.permute.xlu0 %216
      %v219 = vunpack.c.l.b16 %v179
      %v220 = vpack.c.b16 %v185, %v219
      %vm221 = vcmask 1046528
      %v222 = vrot.slane %v220, 1
      %v223 = vrot.slane %v189, 1
      %v224 = vsel %vm221, %v222, %v223
      %v225 = vrot.slane %v192, 1
      %v226 = vsel %vm221, %v223, %v225
      %227 = vrot.lane.b32.xlu0 %v224, 64
      %v228 = vpop.permute.xlu0 %227
      %229 = vrot.lane.b32.xlu0 %v226, 64
      %v230 = vpop.permute.xlu0 %229
      %vm231 = vcmask 261120
      %v233 = vsel %vm231, %v188, %v215
      %v235 = vsel %vm231, %v189, %v217
      %vm236 = vcmask 523264
      %v238 = vsel %vm236, %v233, %v228
      %v240 = vsel %vm236, %v235, %v230
      %v241 = vld [vmem:[%s1] sm:$0xff]
      %v242 = vld [vmem:[%s1 + $0x8] sm:$0xff]
      %v243 = vld [vmem:[%s1 + $0x10] sm:$0xff]
      %v244 = vld [vmem:[%s1 + $0x18] sm:$0xff]
      %v245 = vld [vmem:[%s1 + $0x20] sm:$0xff]
      %v246 = vld [vmem:[%s1 + $0x28] sm:$0xff]
      %v247 = vld [vmem:[%s1 + $0x30] sm:$0xff]
      %v248 = vld [vmem:[%s1 + $0x38] sm:$0xff]
      %v249 = vld [vmem:[%s1 + $0x40] sm:$0xff]
      %v250 = vld [vmem:[%s1 + $0x48] sm:$0xff]
      %v251 = vld [vmem:[%s1 + $0x50] sm:$0xff]
      %v252 = vld [vmem:[%s1 + $0x58] sm:$0xff]
      %v265 = vunpack.c.l.b16 %v241
      %v266 = vunpack.c.h.b16 %v241
      %v267 = vunpack.c.l.b16 %v242
      %v268 = vunpack.c.h.b16 %v242
      %v269 = vunpack.c.l.b16 %v243
      %v270 = vunpack.c.h.b16 %v243
      %v271 = vunpack.c.l.b16 %v244
      %v272 = vunpack.c.h.b16 %v244
      %v273 = vunpack.c.l.b16 %v245
      %v274 = vunpack.c.h.b16 %v245
      %v275 = vunpack.c.l.b16 %v246
      %v276 = vunpack.c.h.b16 %v246
      %v277 = vunpack.c.l.b16 %v247
      %v278 = vunpack.c.h.b16 %v247
      %v279 = vunpack.c.l.b16 %v248
      %v280 = vunpack.c.h.b16 %v248
      %v281 = vunpack.c.l.b16 %v249
      %v282 = vunpack.c.h.b16 %v249
      %v283 = vunpack.c.l.b16 %v250
      %v284 = vunpack.c.h.b16 %v250
      %v285 = vunpack.c.l.b16 %v251
      %v286 = vunpack.c.h.b16 %v251
      %v287 = vunpack.c.l.b16 %v252
      %v288 = vunpack.c.h.b16 %v252
      %v289 = vpack.c.b16 %v267, %v265
      %v290 = vpack.c.b16 %v268, %v266
      %v291 = vpack.c.b16 %v271, %v269
      %v292 = vpack.c.b16 %v272, %v270
      %v293 = vpack.c.b16 %v275, %v273
      %v294 = vpack.c.b16 %v276, %v274
      %v295 = vpack.c.b16 %v279, %v277
      %v296 = vpack.c.b16 %v280, %v278
      %v297 = vpack.c.b16 %v283, %v281
      %v298 = vpack.c.b16 %v284, %v282
      %v299 = vpack.c.b16 %v287, %v285
      %v300 = vpack.c.b16 %v288, %v286
      %vm313 = vcmask 785408
      %v314 = vsel %vm313, %v238, 0
      %v316 = vsel %vm313, %v240, 0
      %318 = vmatprep.subr.bf16.mxu0 %v290
      %319 = vmatpush1.bf16.msra.mxu0 %v289
      %320 = vmatprep.subr.bf16.mxu0 %v292
      %321 = vmatpush1.bf16.msra.mxu0 %v291
      %322 = vmatprep.subr.bf16.mxu0 %v294
      %323 = vmatpush1.bf16.msra.mxu0 %v293
      %324 = vmatprep.subr.bf16.mxu0 %v296
      %325 = vmatpush1.bf16.msra.mxu0 %v295
      %326 = vmatprep.subr.bf16.mxu0 %v298
      %327 = vmatpush1.bf16.msra.mxu0 %v297
      %328 = vmatprep.subr.bf16.mxu0 %v300
      %329 = vmatpush1.bf16.msra.mxu0 %v299
      %330 = vmatprep.subr.bf16.mxu0 0
      %331 = vmatpush1.bf16.msra.mxu0 0
      %332 = vmatprep.subr.bf16.mxu0 0
      %333 = vmatpush1.bf16.msra.mxu0 0
      %334 = vmatprep.subr.bf16.mxu0 0
      %335 = vmatpush1.bf16.msra.mxu0 0
      %336 = vmatprep.subr.bf16.mxu0 0
      %337 = vmatpush1.bf16.msra.mxu0 0
      %338 = vmatprep.subr.bf16.mxu0 0
      %339 = vmatpush1.bf16.msra.mxu0 0
      %340 = vmatprep.subr.bf16.mxu0 0
      %341 = vmatpush1.bf16.msra.mxu0 0
      %342 = vmatprep.subr.bf16.mxu0 0
      %343 = vmatpush1.bf16.msra.mxu0 0
      %344 = vmatprep.subr.bf16.mxu0 0
      %345 = vmatpush1.bf16.msra.mxu0 0
      %346 = vmatprep.subr.bf16.mxu0 0
      %347 = vmatpush1.bf16.msra.mxu0 0
      %348 = vmatprep.subr.bf16.mxu0 0
      %349 = vmatpush1.bf16.msra.mxu0 0
      %350 = vmatprep.mubr.bf16.mxu0 0
      %351 = vmatmul.mubr.bf16.gmra.mrb[0].mxu0 %v314
      %v352 = vpop.f32.mrb[0].mxu0
      %v353 = vadd.f32 0.0, %v352
      %v354 = vpop.f32.mrb[0].mxu0
      %v355 = vadd.f32 0.0, %v354
      %v356 = vpop.f32.mrb[0].mxu0
      %v357 = vadd.f32 0.0, %v356
      %v358 = vpop.f32.mrb[0].mxu0
      %v359 = vadd.f32 0.0, %v358
      %360 = vmatprep.mubr.bf16.mxu0 0
      %361 = vmatmul.mubr.bf16.gmra.mrb[0].mxu0 %v316
      %v362 = vpop.f32.mrb[0].mxu0
      %v363 = vadd.f32 0.0, %v362
      %v364 = vpop.f32.mrb[0].mxu0
      %v365 = vadd.f32 0.0, %v364
      %v366 = vpop.f32.mrb[0].mxu0
      %v367 = vadd.f32 0.0, %v366
      %v368 = vpop.f32.mrb[0].mxu0
      %v369 = vadd.f32 0.0, %v368
      %370 = vdwg.mxu0
      %v371 = vlaneseq
      %v372 = vshrl.u32 %v371, 7
      %v373 = vadd.s32 %v372, 8
      %vm374 = vcmp.lt.s32.totalorder %v372, 10
      %vm375 = vcmp.lt.s32.totalorder %v373, 10
      %v376 = vsel %vm374, 1, 0
      %v377 = vsel %vm375, 1, 0
      %vm378 = vcmp.eq.s32.totalorder %v376, 1
      %vm379 = vcmp.eq.s32.totalorder %v377, 1
      %v380 = vsel %vm378, %v353, -inf
      %v381 = vsel %vm378, %v355, -inf
      %v382 = vsel %vm379, %v357, -inf
      %v383 = vsel %vm379, %v359, -inf
      %v384 = vsel %vm378, %v363, -inf
      %v385 = vsel %vm378, %v365, -inf
      %v386 = vsel %vm379, %v367, -inf
      %v387 = vsel %vm379, %v369, -inf
      %v388 = vmax.f32 %v380, %v382
      %v389 = vrot.slane %v388, 4
      %v390 = vmax.f32 %v388, %v389
      %v391 = vrot.slane %v390, 2
      %v392 = vmax.f32 %v390, %v391
      %v393 = vrot.slane %v392, 1
      %v394 = vmax.f32 %v392, %v393
      %v395 = vmax.f32 %v381, %v383
      %v396 = vrot.slane %v395, 4
      %v397 = vmax.f32 %v395, %v396
      %v398 = vrot.slane %v397, 2
      %v399 = vmax.f32 %v397, %v398
      %v400 = vrot.slane %v399, 1
      %v401 = vmax.f32 %v399, %v400
      %v402 = vmax.f32 %v384, %v386
      %v403 = vrot.slane %v402, 4
      %v404 = vmax.f32 %v402, %v403
      %v405 = vrot.slane %v404, 2
      %v406 = vmax.f32 %v404, %v405
      %v407 = vrot.slane %v406, 1
      %v408 = vmax.f32 %v406, %v407
      %v409 = vmax.f32 %v385, %v387
      %v410 = vrot.slane %v409, 4
      %v411 = vmax.f32 %v409, %v410
      %v412 = vrot.slane %v411, 2
      %v413 = vmax.f32 %v411, %v412
      %v414 = vrot.slane %v413, 1
      %v415 = vmax.f32 %v413, %v414
      %v416 = vld [vmem:[%s2] sm:$0x3]
      %v418 = vlaneseq
      %v419 = vshrl.u32 %v418, 7
      %v420 = vsub.s32 0, %v419
      %v421 = vrot.slane %v416, %v420
      %v422 = vlaneseq
      %v423 = vshrl.u32 %v422, 7
      %v424 = vsub.s32 1, %v423
      %v425 = vrot.slane %v416, %v424
      %v428 = vadd.f32 %v394, %v421
      %v429 = vadd.f32 %v401, %v425
      %v430 = vadd.f32 %v408, %v421
      %v431 = vadd.f32 %v415, %v425
      %v436 = vcombine.low %v428, %v429
      %v438 = vunpack.c.l.s4 1983009808
      %v439 = vunpack.c.0.s8 %v438
      %v440 = vlaneseq
      %v441 = vshrl.u32 %v440, 7
      %v442 = vsub.s32 %v439, %v441
      %v443 = vrot.slane %v436, %v442
      %v444 = vcombine.low %v430, %v431
      %v446 = vunpack.c.l.s4 1983009808
      %v447 = vunpack.c.0.s8 %v446
      %v448 = vlaneseq
      %v449 = vshrl.u32 %v448, 7
      %v450 = vsub.s32 %v447, %v449
      %v451 = vrot.slane %v444, %v450
      %vm452 = vcmask 1044484
      %v453 = vsel %vm452, %v443, %v443
      %vm454 = vcmask 1046534
      %v455 = vsel %vm454, %v443, %v453
      %v456 = vrot.slane %v451, 7
      %vm457 = vcmask 1041409
      %v458 = vsel %vm457, %v456, %v455
      %vm459 = vcmask 1043459
      %v460 = vsel %vm459, %v456, %v458
      %vm461 = vcmask 1045509
      %v462 = vsel %vm461, %v456, %v460
      %vm463 = vcmask 1047559
      %v464 = vsel %vm463, %v456, %v462
      %466 = vst [vmem:[%s172] sm:$0xf] %v464
      %p467 = scmp.lt.s32.totalorder %s14, 1
      %s468 = scalar_select %p467, %s14, 1
      %s469 = smul.addr %s468, 2
      %s470 = smul.addr %s469, 2
      %s471 = scalar_lea.vmem %s3, %s470
      // Predicated region
      $region33: #{_cnn_encoder_impl.1} parent=31 // pred_check
        %p472 = pneg %p100
      $region34: #{_cnn_encoder_impl.1} parent=31 // pred_check_branch
        %474 = sbr.rel (%p472) target = $region36
      $region35: #{_cnn_encoder_impl.1} parent=31 // pred_region
        _
      $region36: #{_cnn_encoder_impl.1} parent=31 // pred_fallthru
        _
    $region32: #{_cnn_encoder_impl.1} parent=5 // pred_fallthru
      _
    %p475 = scmp.le.s32.totalorder 2, %s9
    // Predicated region
    $region37: #{_cnn_encoder_impl.1} parent=5 // pred_check
      %p476 = pneg %p475
    $region38: #{_cnn_encoder_impl.1} parent=5 // pred_check_branch
      %478 = sbr.rel (%p476) target = $region40
    $region39: #{_cnn_encoder_impl.1} parent=5 // pred_region
      %s479 = ssub.s32 %s9, 2
      // Predicated region
      $region41: #{_cnn_encoder_impl.1} parent=39 // pred_check
        %p480 = pneg %p106
      $region42: #{_cnn_encoder_impl.1} parent=39 // pred_check_branch
        %482 = sbr.rel (%p480) target = $region44
      $region43: #{_cnn_encoder_impl.1} parent=39 // pred_region
        %p483 = scmp.lt.s32.totalorder %s15, 1
        %s484 = scalar_select %p483, %s15, 1
        %s485 = smul.addr %s484, 2
        %s486 = smul.addr %s485, 2
        %s487 = scalar_lea.vmem %s3, %s486
      $region44: #{_cnn_encoder_impl.1} parent=39 // pred_fallthru
        _
    $region40: #{_cnn_encoder_impl.1} parent=5 // pred_fallthru
      _
  $region6: #{_cnn_encoder_impl.1} parent=0 // loop_footer
    %s13 = sadd.s32 1, %s9
  $region7: #{_cnn_encoder_impl.1} parent=0 // loop_footer_branch
    %8 = sbr.rel target = $region3
  $region8: #{_cnn_encoder_impl.1} parent=0 // loop_exit
    _

// kernel: _cnn_encoder_impl.1
$region0: #{_cnn_encoder_impl.1}
  #allocation0 [shape = 'u32[]', space=smem, size = 0x4, offset = 0x4, fixed_abs, tag = 'smem constant byte address 0x4 - core index']
  #allocation1 [shape = 'u32[144,128]{1,0:T(1,128)}', space=vmem, size = 0x12000, scoped, tag = 'internal scratch']
  %s0 = inlined_call_operand.vmem [shape: bf16[96,32], index: 0, kind: input, shape index: {}]
  %s1 = inlined_call_operand.vmem [shape: bf16[3,32,256], index: 1, kind: input, shape index: {}]
  %s2 = inlined_call_operand.vmem [shape: f32[1,256], index: 2, kind: input, shape index: {}]
  %s3 = inlined_call_operand.vmem [shape: f32[2,2,256], index: 3, kind: output, shape index: {}]
  %s4 = sld [smem:[#allocation0]]
  $region45: #{_cnn_encoder_impl.1} parent=0
    _
  %s6 = ssub.s32 1, %s4
  %s7 = scalar_select 0, %s6, %s4
  loop: start=0, step=1, limit=4
  $region2: #{_cnn_encoder_impl.1} parent=0 // loop_pre_header
    _
  $region3: #{_cnn_encoder_impl.1} parent=0 // loop_header
    %s9 = sphi 0, %s13
    %p10 = scmp.ge.s32.totalorder %s9, 4
    %s19 = sphi 0, %s21
    %s22 = sphi 0, %s19
    %s23 = sphi 0, %s22
    %s39 = sphi 0, %s23
    %s43 = sphi 0, %s43
    %s45 = sphi 0, %s43
    %s46 = sphi 0, %s45
    %s60 = sphi 0, %s46
    %s64 = sphi 0, %s64
    %s66 = sphi 0, %s64
    %s67 = sphi 0, %s66
    %s81 = sphi 0, %s67
    %s87 = sphi 0, %s89
    %s90 = sphi 0, %s87
    %s91 = sphi 0, %s90
    %s107 = sphi 0, %s91
  $region4: #{_cnn_encoder_impl.1} parent=0 // loop_header_branch
    %12 = sbr.rel (%p10) target = $region8
  $region5: #{_cnn_encoder_impl.1} parent=0 // loop_body
    %s14 = ssub.s32 %s9, 1
    %s15 = ssub.s32 %s9, 2
    %s16 = sadd.s32 %s9, 1
    %s17 = ssub.s32 %s9, %s16
    %p18 = scmp.eq.s32.totalorder %s17, 0
    %s20 = sadd.s32 %s19, 1
    %s21 = scalar_select %p18, %s19, %s20
    %p24 = pneg %p18
    %p25 = scmp.eq.s32.totalorder %s9, 1
    %p26 = por %p24, %p25
    %p27 = scmp.ne.s32.totalorder %s19, %s22
    %p28 = scmp.eq.s32.totalorder %s9, 0
    %p29 = por %p27, %p28
    %p30 = scmp.ne.s32.totalorder %s19, %s22
    %p31 = scmp.eq.s32.totalorder %s14, 1
    %p32 = por %p30, %p31
    %p33 = scmp.ne.s32.totalorder %s22, %s23
    %p34 = scmp.eq.s32.totalorder %s14, 0
    %p35 = por %p33, %p34
    %p36 = scmp.ne.s32.totalorder %s22, %s23
    %p37 = scmp.eq.s32.totalorder %s15, 1
    %p38 = por %p36, %p37
    %p40 = scmp.ne.s32.totalorder %s23, %s39
    %p41 = scmp.eq.s32.totalorder %s15, 0
    %p42 = por %p40, %p41
    %s44 = sadd.s32 %s43, 1
    %p47 = scmp.eq.s32.totalorder %s9, 1
    %p48 = scmp.ne.s32.totalorder %s43, %s45
    %p49 = scmp.eq.s32.totalorder %s9, 0
    %p50 = por %p48, %p49
    %p51 = scmp.ne.s32.totalorder %s43, %s45
    %p52 = scmp.eq.s32.totalorder %s14, 1
    %p53 = por %p51, %p52
    %p54 = scmp.ne.s32.totalorder %s45, %s46
    %p55 = scmp.eq.s32.totalorder %s14, 0
    %p56 = por %p54, %p55
    %p57 = scmp.ne.s32.totalorder %s45, %s46
    %p58 = scmp.eq.s32.totalorder %s15, 1
    %p59 = por %p57, %p58
    %p61 = scmp.ne.s32.totalorder %s46, %s60
    %p62 = scmp.eq.s32.totalorder %s15, 0
    %p63 = por %p61, %p62
    %s65 = sadd.s32 %s64, 1
    %p68 = scmp.eq.s32.totalorder %s9, 1
    %p69 = scmp.ne.s32.totalorder %s64, %s66
    %p70 = scmp.eq.s32.totalorder %s9, 0
    %p71 = por %p69, %p70
    %p72 = scmp.ne.s32.totalorder %s64, %s66
    %p73 = scmp.eq.s32.totalorder %s14, 1
    %p74 = por %p72, %p73
    %p75 = scmp.ne.s32.totalorder %s66, %s67
    %p76 = scmp.eq.s32.totalorder %s14, 0
    %p77 = por %p75, %p76
    %p78 = scmp.ne.s32.totalorder %s66, %s67
    %p79 = scmp.eq.s32.totalorder %s15, 1
    %p80 = por %p78, %p79
    %p82 = scmp.ne.s32.totalorder %s67, %s81
    %p83 = scmp.eq.s32.totalorder %s15, 0
    %p84 = por %p82, %p83
    %s85 = ssub.s32 %s9, %s16
    %p86 = scmp.eq.s32.totalorder %s85, 0
    %s88 = sadd.s32 %s87, 1
    %s89 = scalar_select %p86, %s87, %s88
    %p92 = pneg %p86
    %p93 = scmp.eq.s32.totalorder %s9, 1
    %p94 = por %p92, %p93
    %p95 = scmp.ne.s32.totalorder %s87, %s90
    %p96 = scmp.eq.s32.totalorder %s9, 0
    %p97 = por %p95, %p96
    %p98 = scmp.ne.s32.totalorder %s87, %s90
    %p99 = scmp.eq.s32.totalorder %s14, 1
    %p100 = por %p98, %p99
    %p101 = scmp.ne.s32.totalorder %s90, %s91
    %p102 = scmp.eq.s32.totalorder %s14, 0
    %p103 = por %p101, %p102
    %p104 = scmp.ne.s32.totalorder %s90, %s91
    %p105 = scmp.eq.s32.totalorder %s15, 1
    %p106 = por %p104, %p105
    %p108 = scmp.ne.s32.totalorder %s91, %s107
    %p109 = scmp.eq.s32.totalorder %s15, 0
    %p110 = por %p108, %p109
    %p111 = scmp.le.s32.totalorder 1, %s9
    %p112 = scmp.lt.s32.totalorder %s9, 3
    %p113 = pnand %p111, %p112
    %p114 = pneg %p113
    // Predicated region
    $region9: #{_cnn_encoder_impl.1} parent=5 // pred_check
      _
    $region10: #{_cnn_encoder_impl.1} parent=5 // pred_check_branch
      %116 = sbr.rel (%p113) target = $region12
    $region11: #{_cnn_encoder_impl.1} parent=5 // pred_region
      %s117 = ssub.s32 %s9, 1
      // Predicated region
      $region13: #{_cnn_encoder_impl.1} parent=11 // pred_check
        %p118 = pneg %p56
      $region14: #{_cnn_encoder_impl.1} parent=11 // pred_check_branch
        %120 = sbr.rel (%p118) target = $region16
      $region15: #{_cnn_encoder_impl.1} parent=11 // pred_region
        _
      $region16: #{_cnn_encoder_impl.1} parent=11 // pred_fallthru
        _
      // Predicated region
      $region17: #{_cnn_encoder_impl.1} parent=11 // pred_check
        %p121 = pneg %p77
      $region18: #{_cnn_encoder_impl.1} parent=11 // pred_check_branch
        %123 = sbr.rel (%p121) target = $region20
      $region19: #{_cnn_encoder_impl.1} parent=11 // pred_region
        _
      $region20: #{_cnn_encoder_impl.1} parent=11 // pred_fallthru
        _
    $region12: #{_cnn_encoder_impl.1} parent=5 // pred_fallthru
      _
    %p124 = scmp.lt.s32.totalorder %s9, 2
    // Predicated region
    $region21: #{_cnn_encoder_impl.1} parent=5 // pred_check
      %p125 = pneg %p124
    $region22: #{_cnn_encoder_impl.1} parent=5 // pred_check_branch
      %127 = sbr.rel (%p125) target = $region24
    $region23: #{_cnn_encoder_impl.1} parent=5 // pred_region
      // Predicated region
      $region25: #{_cnn_encoder_impl.1} parent=23 // pred_check
        %p128 = pneg %p29
      $region26: #{_cnn_encoder_impl.1} parent=23 // pred_check_branch
        %130 = sbr.rel (%p128) target = $region28
      $region27: #{_cnn_encoder_impl.1} parent=23 // pred_region
        %s131 = smul.u32 6, %s9
        %p132 = scmp.lt.s32.totalorder %s131, 11
        %s133 = scalar_select %p132, %s131, 11
        %s134 = smul.addr %s133, 4
        %s135 = scalar_lea.vmem %s0, %s134
        %s136 = smul.u32 6, %s9
      $region28: #{_cnn_encoder_impl.1} parent=23 // pred_fallthru
        _
    $region24: #{_cnn_encoder_impl.1} parent=5 // pred_fallthru
      _
    %p137 = scmp.le.s32.totalorder 1, %s9
    %p138 = scmp.lt.s32.totalorder %s9, 3
    %p139 = pnand %p137, %p138
    %p140 = pneg %p139
    // Predicated region
    $region29: #{_cnn_encoder_impl.1} parent=5 // pred_check
      _
    $region30: #{_cnn_encoder_impl.1} parent=5 // pred_check_branch
      %142 = sbr.rel (%p139) target = $region32
    $region31: #{_cnn_encoder_impl.1} parent=5 // pred_region
      %s143 = ssub.s32 %s9, 1
      %s144 = smul.u32 6, %s14
      %p145 = scmp.lt.s32.totalorder %s144, 11
      %s146 = scalar_select %p145, %s144, 11
      %s147 = smul.addr %s146, 4
      %s148 = scalar_lea.vmem %s0, %s147
      %p149 = pneg %p35
      %p150 = pneg %p32
      %p151 = pneg %p56
      %p152 = pneg %p53
      %p153 = pneg %p77
      %p154 = pneg %p74
      %p155 = pneg %p103
      %p156 = pneg %p100
      %p157 = scmp.lt.s32.totalorder %s14, 1
      %s158 = scalar_select %p157, %s14, 1
      %s159 = smul.addr %s158, 2
      %s160 = smul.addr %s159, 2
      %s161 = scalar_lea.vmem %s3, %s160
      %s162 = smul.u32 6, %s14
      %p163 = scmp.lt.s32.totalorder %s162, 11
      %s164 = scalar_select %p163, %s162, 11
      %s165 = smul.addr %s164, 4
      %s166 = scalar_lea.vmem %s0, %s165
      %s167 = smul.u32 6, %s14
      %p168 = scmp.lt.s32.totalorder %s14, 1
      %s169 = scalar_select %p168, %s14, 1
      %s170 = smul.addr %s169, 2
      %s171 = smul.addr %s170, 2
      %s172 = scalar_lea.vmem %s3, %s171
      %v174 = vld [vmem:[%s166] sm:$0xf]
      %v175 = vld [vmem:[%s166 + $0x4] sm:$0xf]
      %v176 = vld [vmem:[%s166 + $0x8] sm:$0xf]
      %v177 = vld [vmem:[%s166 + $0xc] sm:$0xf]
      %v178 = vld [vmem:[%s1] sm:$0xff]
      %v179 = vld [vmem:[%s1 + $0x8] sm:$0xff]
      %v180 = vld [vmem:[%s1 + $0x10] sm:$0xff]
      %v181 = vld [vmem:[%s1 + $0x18] sm:$0xff]
      %v182 = vld [vmem:[%s166 + $0x10] sm:$0x1]
      %s183 = scalar_lea.vmem %s1, 32
      %v184 = vld [vmem:[%s183] sm:$0xff]
      %v185 = vld [vmem:[%s183 + $0x8] sm:$0xff]
      %v186 = vld [vmem:[%s183 + $0x10] sm:$0xff]
      %v187 = vld [vmem:[%s183 + $0x18] sm:$0xff]
      %v193 = vunpack.c.l.b16 %v174
      %v194 = vunpack.c.l.b16 %v175
      %v195 = vunpack.c.l.b16 %v176
      %v196 = vunpack.c.l.b16 %v177
      %v197 = vunpack.c.l.b16 %v182
      %v198 = vpack.c.b16 %v194, %v193
      %v199 = vpack.c.b16 %v196, %v195
      %v200 = vpack.c.b16 %v197, %v197
      %vm201 = vsmask.f32 7424
      %v203 = vshrl.u32 %v198, 16
      %v205 = vshll.u32 %v198, 16
      %v207 = vrot.slane %v205, 1
      %v208 = vor.u32 %v203, %v207
      %v210 = vshll.u32 %v199, 16
      %v212 = vrot.slane %v210, 1
      %v213 = vsel %vm201, %v208, %v212
      %v214 = vshrl.u32 %v199, 16
      %v216 = vor.u32 %v214, %v212
      %v218 = vshll.u32 %v200, 16
      %v220 = vrot.slane %v218, 1
      %v221 = vsel %vm201, %v216, %v220
      %v226 = vunpack.c.l.b16 %v184
      %v227 = vunpack.c.h.b16 %v184
      %v228 = vunpack.c.l.b16 %v185
      %v229 = vunpack.c.h.b16 %v185
      %v230 = vunpack.c.l.b16 %v186
      %v231 = vunpack.c.h.b16 %v186
      %v232 = vunpack.c.l.b16 %v187
      %v233 = vunpack.c.h.b16 %v187
      %v234 = vpack.c.b16 %v228, %v226
      %v235 = vpack.c.b16 %v229, %v227
      %v236 = vpack.c.b16 %v232, %v230
      %v237 = vpack.c.b16 %v233, %v231
      %vm242 = vcmask 261120
      %v244 = vsel %vm242, %v213, 0
      %v247 = vsel %vm242, %v221, 0
      %249 = vmatprep.subr.bf16.mxu0 %v235
      %250 = vmatpush1.bf16.msra.mxu0 %v234
      %251 = vmatprep.subr.bf16.mxu0 %v237
      %252 = vmatpush1.bf16.msra.mxu0 %v236
      %253 = vmatprep.subr.bf16.mxu0 0
      %254 = vmatpush1.bf16.msra.mxu0 0
      %255 = vmatprep.subr.bf16.mxu0 0
      %256 = vmatpush1.bf16.msra.mxu0 0
      %257 = vmatprep.subr.bf16.mxu0 0
      %258 = vmatpush1.bf16.msra.mxu0 0
      %259 = vmatprep.subr.bf16.mxu0 0
      %260 = vmatpush1.bf16.msra.mxu0 0
      %261 = vmatprep.subr.bf16.mxu0 0
      %262 = vmatpush1.bf16.msra.mxu0 0
      %263 = vmatprep.subr.bf16.mxu0 0
      %264 = vmatpush1.bf16.msra.mxu0 0
      %265 = vmatprep.subr.bf16.mxu0 0
      %266 = vmatpush1.bf16.msra.mxu0 0
      %267 = vmatprep.subr.bf16.mxu0 0
      %268 = vmatpush1.bf16.msra.mxu0 0
      %269 = vmatprep.subr.bf16.mxu0 0
      %270 = vmatpush1.bf16.msra.mxu0 0
      %271 = vmatprep.subr.bf16.mxu0 0
      %272 = vmatpush1.bf16.msra.mxu0 0
      %273 = vmatprep.subr.bf16.mxu0 0
      %274 = vmatpush1.bf16.msra.mxu0 0
      %275 = vmatprep.subr.bf16.mxu0 0
      %276 = vmatpush1.bf16.msra.mxu0 0
      %277 = vmatprep.subr.bf16.mxu0 0
      %278 = vmatpush1.bf16.msra.mxu0 0
      %279 = vmatprep.subr.bf16.mxu0 0
      %280 = vmatpush1.bf16.msra.mxu0 0
      %281 = vmatprep.mubr.bf16.mxu0 0
      %282 = vmatmul.mubr.bf16.gmra.mrb[0].mxu0 %v244
      %v283 = vpop.f32.mrb[0].mxu0
      %v284 = vadd.f32 0.0, %v283
      %v285 = vpop.f32.mrb[0].mxu0
      %v286 = vadd.f32 0.0, %v285
      %v287 = vpop.f32.mrb[0].mxu0
      %v288 = vadd.f32 0.0, %v287
      %v289 = vpop.f32.mrb[0].mxu0
      %v290 = vadd.f32 0.0, %v289
      %291 = vmatprep.mubr.bf16.mxu0 0
      %292 = vmatmul.mubr.bf16.gmra.mrb[0].mxu0 %v247
      %v293 = vpop.f32.mrb[0].mxu0
      %v294 = vadd.f32 0.0, %v293
      %v295 = vpop.f32.mrb[0].mxu0
      %v296 = vadd.f32 0.0, %v295
      %v297 = vpop.f32.mrb[0].mxu0
      %v298 = vadd.f32 0.0, %v297
      %v299 = vpop.f32.mrb[0].mxu0
      %v300 = vadd.f32 0.0, %v299
      %301 = vdwg.mxu0
      %v306 = vunpack.c.l.b16 %v178
      %v307 = vunpack.c.h.b16 %v178
      %v308 = vunpack.c.l.b16 %v179
      %v309 = vunpack.c.h.b16 %v179
      %v310 = vunpack.c.l.b16 %v180
      %v311 = vunpack.c.h.b16 %v180
      %v312 = vunpack.c.l.b16 %v181
      %v313 = vunpack.c.h.b16 %v181
      %v314 = vpack.c.b16 %v308, %v306
      %v315 = vpack.c.b16 %v309, %v307
      %v316 = vpack.c.b16 %v312, %v310
      %v317 = vpack.c.b16 %v313, %v311
      %v322 = vsel %vm242, %v198, 0
      %v324 = vsel %vm242, %v199, 0
      %326 = vmatprep.subr.bf16.mxu0 %v315
      %327 = vmatpush1.bf16.msra.mxu0 %v314
      %328 = vmatprep.subr.bf16.mxu0 %v317
      %329 = vmatpush1.bf16.msra.mxu0 %v316
      %330 = vmatprep.subr.bf16.mxu0 0
      %331 = vmatpush1.bf16.msra.mxu0 0
      %332 = vmatprep.subr.bf16.mxu0 0
      %333 = vmatpush1.bf16.msra.mxu0 0
      %334 = vmatprep.subr.bf16.mxu0 0
      %335 = vmatpush1.bf16.msra.mxu0 0
      %336 = vmatprep.subr.bf16.mxu0 0
      %337 = vmatpush1.bf16.msra.mxu0 0
      %338 = vmatprep.subr.bf16.mxu0 0
      %339 = vmatpush1.bf16.msra.mxu0 0
      %340 = vmatprep.subr.bf16.mxu0 0
      %341 = vmatpush1.bf16.msra.mxu0 0
      %342 = vmatprep.subr.bf16.mxu0 0
      %343 = vmatpush1.bf16.msra.mxu0 0
      %344 = vmatprep.subr.bf16.mxu0 0
      %345 = vmatpush1.bf16.msra.mxu0 0
      %346 = vmatprep.subr.bf16.mxu0 0
      %347 = vmatpush1.bf16.msra.mxu0 0
      %348 = vmatprep.subr.bf16.mxu0 0
      %349 = vmatpush1.bf16.msra.mxu0 0
      %350 = vmatprep.subr.bf16.mxu0 0
      %351 = vmatpush1.bf16.msra.mxu0 0
      %352 = vmatprep.subr.bf16.mxu0 0
      %353 = vmatpush1.bf16.msra.mxu0 0
      %354 = vmatprep.subr.bf16.mxu0 0
      %355 = vmatpush1.bf16.msra.mxu0 0
      %356 = vmatprep.subr.bf16.mxu0 0
      %357 = vmatpush1.bf16.msra.mxu0 0
      %358 = vmatprep.mubr.bf16.mxu0 0
      %359 = vmatmul.mubr.bf16.gmra.mrb[0].mxu0 %v322
      %v360 = vpop.f32.mrb[0].mxu0
      %v361 = vadd.f32 %v284, %v360
      %v362 = vpop.f32.mrb[0].mxu0
      %v363 = vadd.f32 %v286, %v362
      %v364 = vpop.f32.mrb[0].mxu0
      %v365 = vadd.f32 %v288, %v364
      %v366 = vpop.f32.mrb[0].mxu0
      %v367 = vadd.f32 %v290, %v366
      %368 = vmatprep.mubr.bf16.mxu0 0
      %369 = vmatmul.mubr.bf16.gmra.mrb[0].mxu0 %v324
      %v370 = vpop.f32.mrb[0].mxu0
      %v371 = vadd.f32 %v294, %v370
      %v372 = vpop.f32.mrb[0].mxu0
      %v373 = vadd.f32 %v296, %v372
      %v374 = vpop.f32.mrb[0].mxu0
      %v375 = vadd.f32 %v298, %v374
      %v376 = vpop.f32.mrb[0].mxu0
      %v377 = vadd.f32 %v300, %v376
      %378 = vdwg.mxu0
      %v379 = vld [vmem:[%s166] sm:$0xe]
      %s380 = scalar_lea.vmem %s1, 64
      %v381 = vld [vmem:[%s380] sm:$0xff]
      %v382 = vld [vmem:[%s380 + $0x8] sm:$0xff]
      %v383 = vld [vmem:[%s380 + $0x10] sm:$0xff]
      %v384 = vld [vmem:[%s380 + $0x18] sm:$0xff]
      %v386 = vunpack.c.l.b16 %v379
      %v387 = vpack.c.b16 %v194, %v386
      %vm388 = vcmask 1046528
      %v389 = vrot.slane %v387, 1
      %v390 = vrot.slane %v199, 1
      %v391 = vsel %vm388, %v389, %v390
      %v392 = vrot.slane %v200, 1
      %v393 = vsel %vm388, %v390, %v392
      %v398 = vunpack.c.l.b16 %v381
      %v399 = vunpack.c.h.b16 %v381
      %v400 = vunpack.c.l.b16 %v382
      %v401 = vunpack.c.h.b16 %v382
      %v402 = vunpack.c.l.b16 %v383
      %v403 = vunpack.c.h.b16 %v383
      %v404 = vunpack.c.l.b16 %v384
      %v405 = vunpack.c.h.b16 %v384
      %v406 = vpack.c.b16 %v400, %v398
      %v407 = vpack.c.b16 %v401, %v399
      %v408 = vpack.c.b16 %v404, %v402
      %v409 = vpack.c.b16 %v405, %v403
      %v415 = vsel %vm242, %v391, 0
      %v418 = vsel %vm242, %v393, 0
      %420 = vmatprep.subr.bf16.mxu0 %v407
      %421 = vmatpush1.bf16.msra.mxu0 %v406
      %422 = vmatprep.subr.bf16.mxu0 %v409
      %423 = vmatpush1.bf16.msra.mxu0 %v408
      %424 = vmatprep.subr.bf16.mxu0 0
      %425 = vmatpush1.bf16.msra.mxu0 0
      %426 = vmatprep.subr.bf16.mxu0 0
      %427 = vmatpush1.bf16.msra.mxu0 0
      %428 = vmatprep.subr.bf16.mxu0 0
      %429 = vmatpush1.bf16.msra.mxu0 0
      %430 = vmatprep.subr.bf16.mxu0 0
      %431 = vmatpush1.bf16.msra.mxu0 0
      %432 = vmatprep.subr.bf16.mxu0 0
      %433 = vmatpush1.bf16.msra.mxu0 0
      %434 = vmatprep.subr.bf16.mxu0 0
      %435 = vmatpush1.bf16.msra.mxu0 0
      %436 = vmatprep.subr.bf16.mxu0 0
      %437 = vmatpush1.bf16.msra.mxu0 0
      %438 = vmatprep.subr.bf16.mxu0 0
      %439 = vmatpush1.bf16.msra.mxu0 0
      %440 = vmatprep.subr.bf16.mxu0 0
      %441 = vmatpush1.bf16.msra.mxu0 0
      %442 = vmatprep.subr.bf16.mxu0 0
      %443 = vmatpush1.bf16.msra.mxu0 0
      %444 = vmatprep.subr.bf16.mxu0 0
      %445 = vmatpush1.bf16.msra.mxu0 0
      %446 = vmatprep.subr.bf16.mxu0 0
      %447 = vmatpush1.bf16.msra.mxu0 0
      %448 = vmatprep.subr.bf16.mxu0 0
      %449 = vmatpush1.bf16.msra.mxu0 0
      %450 = vmatprep.subr.bf16.mxu0 0
      %451 = vmatpush1.bf16.msra.mxu0 0
      %452 = vmatprep.mubr.bf16.mxu0 0
      %453 = vmatmul.mubr.bf16.gmra.mrb[0].mxu0 %v415
      %v454 = vpop.f32.mrb[0].mxu0
      %v455 = vadd.f32 0.0, %v454
      %v456 = vpop.f32.mrb[0].mxu0
      %v457 = vadd.f32 0.0, %v456
      %v458 = vpop.f32.mrb[0].mxu0
      %v459 = vadd.f32 0.0, %v458
      %v460 = vpop.f32.mrb[0].mxu0
      %v461 = vadd.f32 0.0, %v460
      %462 = vmatprep.mubr.bf16.mxu0 0
      %463 = vmatmul.mubr.bf16.gmra.mrb[0].mxu0 %v418
      %v464 = vpop.f32.mrb[0].mxu0
      %v465 = vadd.f32 0.0, %v464
      %v466 = vpop.f32.mrb[0].mxu0
      %v467 = vadd.f32 0.0, %v466
      %v468 = vpop.f32.mrb[0].mxu0
      %v469 = vadd.f32 0.0, %v468
      %v470 = vpop.f32.mrb[0].mxu0
      %v471 = vadd.f32 0.0, %v470
      %472 = vdwg.mxu0
      %v473 = vadd.f32 %v361, %v455
      %v474 = vadd.f32 %v363, %v457
      %v475 = vadd.f32 %v365, %v459
      %v476 = vadd.f32 %v367, %v461
      %v477 = vadd.f32 %v371, %v465
      %v478 = vadd.f32 %v373, %v467
      %v479 = vadd.f32 %v375, %v469
      %v480 = vadd.f32 %v377, %v471
      %v481 = vlaneseq
      %v482 = vshrl.u32 %v481, 7
      %v483 = vadd.s32 %v482, 8
      %vm484 = vcmp.lt.s32.totalorder %v482, 10
      %vm485 = vcmp.lt.s32.totalorder %v483, 10
      %v486 = vsel %vm484, 1, 0
      %v487 = vsel %vm485, 1, 0
      %vm488 = vcmp.eq.s32.totalorder %v486, 1
      %vm489 = vcmp.eq.s32.totalorder %v487, 1
      %v490 = vsel %vm488, %v473, -inf
      %v491 = vsel %vm488, %v474, -inf
      %v492 = vsel %vm489, %v475, -inf
      %v493 = vsel %vm489, %v476, -inf
      %v494 = vsel %vm488, %v477, -inf
      %v495 = vsel %vm488, %v478, -inf
      %v496 = vsel %vm489, %v479, -inf
      %v497 = vsel %vm489, %v480, -inf
      %v498 = vmax.f32 %v490, %v492
      %v499 = vrot.slane %v498, 4
      %v500 = vmax.f32 %v498, %v499
      %v501 = vrot.slane %v500, 2
      %v502 = vmax.f32 %v500, %v501
      %v503 = vrot.slane %v502, 1
      %v504 = vmax.f32 %v502, %v503
      %v505 = vmax.f32 %v491, %v493
      %v506 = vrot.slane %v505, 4
      %v507 = vmax.f32 %v505, %v506
      %v508 = vrot.slane %v507, 2
      %v509 = vmax.f32 %v507, %v508
      %v510 = vrot.slane %v509, 1
      %v511 = vmax.f32 %v509, %v510
      %v512 = vmax.f32 %v494, %v496
      %v513 = vrot.slane %v512, 4
      %v514 = vmax.f32 %v512, %v513
      %v515 = vrot.slane %v514, 2
      %v516 = vmax.f32 %v514, %v515
      %v517 = vrot.slane %v516, 1
      %v518 = vmax.f32 %v516, %v517
      %v519 = vmax.f32 %v495, %v497
      %v520 = vrot.slane %v519, 4
      %v521 = vmax.f32 %v519, %v520
      %v522 = vrot.slane %v521, 2
      %v523 = vmax.f32 %v521, %v522
      %v524 = vrot.slane %v523, 1
      %v525 = vmax.f32 %v523, %v524
      %v526 = vld [vmem:[%s2] sm:$0x3]
      %v528 = vlaneseq
      %v529 = vshrl.u32 %v528, 7
      %v530 = vsub.s32 0, %v529
      %v531 = vrot.slane %v526, %v530
      %v532 = vlaneseq
      %v533 = vshrl.u32 %v532, 7
      %v534 = vsub.s32 1, %v533
      %v535 = vrot.slane %v526, %v534
      %v538 = vadd.f32 %v504, %v531
      %v539 = vadd.f32 %v511, %v535
      %v540 = vadd.f32 %v518, %v531
      %v541 = vadd.f32 %v525, %v535
      %v546 = vcombine.low %v538, %v539
      %v548 = vunpack.c.l.s4 1983009808
      %v549 = vunpack.c.0.s8 %v548
      %v550 = vlaneseq
      %v551 = vshrl.u32 %v550, 7
      %v552 = vsub.s32 %v549, %v551
      %v553 = vrot.slane %v546, %v552
      %v554 = vcombine.low %v540, %v541
      %v556 = vunpack.c.l.s4 1983009808
      %v557 = vunpack.c.0.s8 %v556
      %v558 = vlaneseq
      %v559 = vshrl.u32 %v558, 7
      %v560 = vsub.s32 %v557, %v559
      %v561 = vrot.slane %v554, %v560
      %vm562 = vcmask 1044484
      %v563 = vsel %vm562, %v553, %v553
      %vm564 = vcmask 1046534
      %v565 = vsel %vm564, %v553, %v563
      %v566 = vrot.slane %v561, 7
      %vm567 = vcmask 1041409
      %v568 = vsel %vm567, %v566, %v565
      %vm569 = vcmask 1043459
      %v570 = vsel %vm569, %v566, %v568
      %vm571 = vcmask 1045509
      %v572 = vsel %vm571, %v566, %v570
      %vm573 = vcmask 1047559
      %v574 = vsel %vm573, %v566, %v572
      %576 = vst [vmem:[%s172] sm:$0xf] %v574
      %p577 = scmp.lt.s32.totalorder %s14, 1
      %s578 = scalar_select %p577, %s14, 1
      %s579 = smul.addr %s578, 2
      %s580 = smul.addr %s579, 2
      %s581 = scalar_lea.vmem %s3, %s580
      // Predicated region
      $region33: #{_cnn_encoder_impl.1} parent=31 // pred_check
        %p582 = pneg %p100
      $region34: #{_cnn_encoder_impl.1} parent=31 // pred_check_branch
        %584 = sbr.rel (%p582) target = $region36
      $region35: #{_cnn_encoder_impl.1} parent=31 // pred_region
        _
      $region36: #{_cnn_encoder_impl.1} parent=31 // pred_fallthru
        _
    $region32: #{_cnn_encoder_impl.1} parent=5 // pred_fallthru
      _
    %p585 = scmp.le.s32.totalorder 2, %s9
    // Predicated region
    $region37: #{_cnn_encoder_impl.1} parent=5 // pred_check
      %p586 = pneg %p585
    $region38: #{_cnn_encoder_impl.1} parent=5 // pred_check_branch
      %588 = sbr.rel (%p586) target = $region40
    $region39: #{_cnn_encoder_impl.1} parent=5 // pred_region
      %s589 = ssub.s32 %s9, 2
      // Predicated region
      $region41: #{_cnn_encoder_impl.1} parent=39 // pred_check
        %p590 = pneg %p106
      $region42: #{_cnn_encoder_impl.1} parent=39 // pred_check_branch
        %592 = sbr.rel (%p590) target = $region44
      $region43: #{_cnn_encoder_impl.1} parent=39 // pred_region
        %p593 = scmp.lt.s32.totalorder %s15, 1
        %s594 = scalar_select %p593, %s15, 1
        %s595 = smul.addr %s594, 2
        %s596 = smul.addr %s595, 2
        %s597 = scalar_lea.vmem %s3, %s596
      $region44: #{_cnn_encoder_impl.1} parent=39 // pred_fallthru
        _
    $region40: #{_cnn_encoder_impl.1} parent=5 // pred_fallthru
      _
  $region6: #{_cnn_encoder_impl.1} parent=0 // loop_footer
    %s13 = sadd.s32 1, %s9
  $region7: #{_cnn_encoder_impl.1} parent=0 // loop_footer_branch
    %8 = sbr.rel target = $region3
  $region8: #{_cnn_encoder_impl.1} parent=0 // loop_exit
    _

</llo_original>
